<compile_context>
chip_gen: v7x
topology: tpu7x:2x2x1
jax: 0.10.0
libtpu: 0.0.40
codegen_flags: <defaults>
</compile_context>

<pallas_src>
import math

import jax
import jax.numpy as jnp
from jax.experimental import pallas as pl
from jax.experimental.pallas import tpu as pltpu


def _round_up(x, m):
    return (x + m - 1) // m * m


def _critic_kernel(xT_ref, w1_ref, b1_ref, w2_ref, b2_ref, wv_ref, out_ref):
    # Feature-major: activations are (features, rows) so hidden size (64) sits on sublanes and
    # the row tile sits on lanes -> no lane padding of activations, no transpose anywhere.
    x = xT_ref[...]                                                       # (D_in, tn) bf16
    h = jnp.dot(w1_ref[...], x, preferred_element_type=jnp.float32) + b1_ref[...]
    h = jnp.maximum(h, 0.0).astype(w2_ref.dtype)                          # (H, tn)
    h = jnp.dot(w2_ref[...], h, preferred_element_type=jnp.float32) + b2_ref[...]
    h = jnp.maximum(h, 0.0).astype(wv_ref.dtype)                          # (H, tn)
    # Value head: (1, H) @ (H, tn) -> (1, tn), natively lane-dense (unmasked vst writeback).
    out_ref[...] = jnp.dot(wv_ref[...], h, preferred_element_type=jnp.float32)


def mlp_critic_pallas(obs2d, act2d, params, *, max_row_tile=2048):
    """obs2d: (N, obs_size), act2d: (N, act_size) -> (N,) float32 values."""
    n = obs2d.shape[0]
    hid = params["w2"].shape[0]
    d_in = params["w1"].shape[1]

    # Feature-major packing: one (D_in, N) bf16 slab (single streamed input per grid step).
    xT = jnp.concatenate([obs2d, act2d], axis=-1).T.astype(jnp.bfloat16)   # (D_in, N)

    # Row tile: clamped to a multiple of 128 (lane axis of both the input slab and the (1, tn)
    # output block), default 2048. Per-step VMEM at tn=2048 is ~0.7 MiB (inputs x2 buffers +
    # two (64, tn) f32 intermediates + ~21 KB of weights), far under every default scoped
    # VMEM limit (v5e 16 MiB, v6e/v7x 32 MiB), so no vmem_limit_bytes override is needed.
    tn = max(128, _round_up(min(max_row_tile, _round_up(n, 128)), 128))
    n_pad = _round_up(n, tn)
    if n_pad != n:
        xT = jnp.pad(xT, ((0, 0), (0, n_pad - n)))

    grid = (n_pad // tn,)

    def resident(shape):
        # Same block every grid step -> weights/biases stay VMEM-resident across the grid.
        return pl.BlockSpec(shape, lambda i: (0, 0))

    out = pl.pallas_call(
        _critic_kernel,
        out_shape=jax.ShapeDtypeStruct((1, n_pad), jnp.float32),
        grid_spec=pl.GridSpec(
            grid=grid,
            in_specs=[
                pl.BlockSpec((d_in, tn), lambda i: (0, i)),   # feature-major row tile of x
                resident((hid, d_in)),                        # w1  (PyTorch (out, in) layout)
                resident((hid, 1)),                           # b1  (column, lane-broadcast)
                resident((hid, hid)),                         # w2
                resident((hid, 1)),                           # b2
                resident((1, hid)),                           # wv
            ],
            out_specs=pl.BlockSpec((1, tn), lambda i: (0, i)),  # lane-dense value row
        ),
        compiler_params=pltpu.CompilerParams(
            dimension_semantics=("parallel",),  # shard row tiles across v7x's 2 TensorCores
        ),
    )(
        xT,
        params["w1"].astype(jnp.bfloat16),
        params["b1"].astype(jnp.float32),
        params["w2"].astype(jnp.bfloat16),
        params["b2"].astype(jnp.float32),
        params["wv"].astype(jnp.bfloat16),
    )
    # bv is a single scalar: add it outside the kernel (one fewer per-step operand / DMA).
    return out[0, :n] + params["bv"]


def lstm_critic_forward(observations, actions, params):
    """Matches LSTMCritic.forward for 3-D observations (observation_normalizer=None).

    The module returns value[-1] for 3-D input, which depends only on observations[-1]
    (actions are broadcast over time), so only the last time step is evaluated.
    """
    assert observations.ndim == 3, "expected time-major (T, B, obs) observations"
    obs_last = observations[-1].astype(jnp.float32)   # (B, obs)
    act = actions.astype(jnp.float32)                 # (B, act)
    return mlp_critic_pallas(obs_last, act, params)   # (B,)


def init_params(key, obs_size, act_size, hidden_size=64):
    """PyTorch nn.Linear default init: U(-1/sqrt(fan_in), 1/sqrt(fan_in)).
    Weights kept in the PyTorch (out, in) layout; biases as (H, 1) columns; bv a scalar."""
    d_in = obs_size + act_size
    k = jax.random.split(key, 6)

    def uniform(kk, shape, fan_in):
        bound = 1.0 / math.sqrt(fan_in)
        return jax.random.uniform(kk, shape, jnp.float32, -bound, bound)

    return {
        "w1": uniform(k[0], (hidden_size, d_in), d_in),
        "b1": uniform(k[1], (hidden_size, 1), d_in),
        "w2": uniform(k[2], (hidden_size, hidden_size), hidden_size),
        "b2": uniform(k[3], (hidden_size, 1), hidden_size),
        "wv": uniform(k[4], (1, hidden_size), hidden_size),
        "bv": uniform(k[5], (), hidden_size),
    }


if __name__ == "__main__":
    # Small shapes consistent with the module's forward: seq T=8, batch B=4,
    # obs_size=12, act_size=4, hidden_size=64 (default), num_layers=2 (default).
    T, B, OBS, ACT, HID = 8, 4, 12, 4, 64

    key = jax.random.PRNGKey(0)
    k_obs, k_act, k_par = jax.random.split(key, 3)

    observations = jax.random.normal(k_obs, (T, B, OBS), jnp.float32)
    actions = jax.random.normal(k_act, (B, ACT), jnp.float32)
    params = init_params(k_par, OBS, ACT, HID)

    value = lstm_critic_forward(observations, actions, params)
    value = jax.block_until_ready(value)
    assert value.shape == (B,), value.shape
    assert bool(jnp.all(jnp.isfinite(value)))

    # Pure-JAX f32 reference (same math as the PyTorch module: concat -> torso -> head -> [-1]).
    comb = jnp.concatenate([observations[-1], actions], axis=-1)
    h_ref = jnp.maximum(comb @ params["w1"].T + params["b1"].T, 0.0)
    h_ref = jnp.maximum(h_ref @ params["w2"].T + params["b2"].T, 0.0)
    ref = (h_ref @ params["wv"].T).reshape(-1) + params["bv"]
    # bf16 operands (f32 accumulation) vs f32 reference -> loose-but-tight-enough tolerance.
    assert jnp.allclose(value, ref, atol=2e-2, rtol=2e-2), (value, ref)

    print("KERNEL_OK")
</pallas_src>

<mosaic_0001>
module attributes {stable_mosaic.version = 11 : i64} {
  func.func @_critic_kernel(%arg0: i32, %arg1: memref<16x128xbf16, #tpu.memory_space<vmem>>, %arg2: memref<64x16xbf16, #tpu.memory_space<vmem>>, %arg3: memref<64x1xf32, #tpu.memory_space<vmem>>, %arg4: memref<64x64xbf16, #tpu.memory_space<vmem>>, %arg5: memref<64x1xf32, #tpu.memory_space<vmem>>, %arg6: memref<1x64xbf16, #tpu.memory_space<vmem>>, %arg7: memref<1x128xf32, #tpu.memory_space<vmem>>) attributes {dimension_semantics = [#tpu.dimension_semantics<parallel>], iteration_bounds = array<i64: 1>, scalar_prefetch = 0 : i64, scratch_operands = 0 : i64, tpu.core_type = #tpu.core_type<tc>, window_params = [{transform_indices = @transform_0, window_bounds = array<i64: 16, 128>}, {pipeline_mode = #tpu.pipeline_mode<synchronous>, transform_indices = @transform_1, window_bounds = array<i64: 64, 16>}, {pipeline_mode = #tpu.pipeline_mode<synchronous>, transform_indices = @transform_2, window_bounds = array<i64: 64, 1>}, {pipeline_mode = #tpu.pipeline_mode<synchronous>, transform_indices = @transform_3, window_bounds = array<i64: 64, 64>}, {pipeline_mode = #tpu.pipeline_mode<synchronous>, transform_indices = @transform_4, window_bounds = array<i64: 64, 1>}, {pipeline_mode = #tpu.pipeline_mode<synchronous>, transform_indices = @transform_5, window_bounds = array<i64: 1, 64>}, {transform_indices = @transform_6, window_bounds = array<i64: 1, 128>}]} {
    %c0 = arith.constant 0 : index
    %c0_0 = arith.constant 0 : index
    %0 = vector.load %arg1[%c0, %c0_0] : memref<16x128xbf16, #tpu.memory_space<vmem>>, vector<16x128xbf16>
    %c0_1 = arith.constant 0 : index
    %c0_2 = arith.constant 0 : index
    %1 = vector.load %arg2[%c0_1, %c0_2] : memref<64x16xbf16, #tpu.memory_space<vmem>>, vector<64x16xbf16>
    %cst = arith.constant dense<0.000000e+00> : vector<64x128xf32>
    %2 = tpu.matmul %1, %0, %cst {dimension_numbers = #tpu.dot_dimension_numbers<[1], [0], [0], [1], [0, 0, 1, 1], [], []>} : vector<64x16xbf16>, vector<16x128xbf16>, vector<64x128xf32> -> vector<64x128xf32>
    %c0_3 = arith.constant 0 : index
    %c0_4 = arith.constant 0 : index
    %3 = vector.load %arg3[%c0_3, %c0_4] : memref<64x1xf32, #tpu.memory_space<vmem>>, vector<64x1xf32>
    %4 = vector.broadcast %3 : vector<64x1xf32> to vector<64x128xf32>
    %5 = arith.addf %2, %4 : vector<64x128xf32>
    %cst_5 = arith.constant 0.000000e+00 : f32
    %6 = vector.broadcast %cst_5 : f32 to vector<64x128xf32>
    %7 = arith.maximumf %5, %6 : vector<64x128xf32>
    %8 = arith.truncf %7 : vector<64x128xf32> to vector<64x128xbf16>
    %c0_6 = arith.constant 0 : index
    %c0_7 = arith.constant 0 : index
    %9 = vector.load %arg4[%c0_6, %c0_7] : memref<64x64xbf16, #tpu.memory_space<vmem>>, vector<64x64xbf16>
    %cst_8 = arith.constant dense<0.000000e+00> : vector<64x128xf32>
    %10 = tpu.matmul %9, %8, %cst_8 {dimension_numbers = #tpu.dot_dimension_numbers<[1], [0], [0], [1], [0, 0, 1, 1], [], []>} : vector<64x64xbf16>, vector<64x128xbf16>, vector<64x128xf32> -> vector<64x128xf32>
    %c0_9 = arith.constant 0 : index
    %c0_10 = arith.constant 0 : index
    %11 = vector.load %arg5[%c0_9, %c0_10] : memref<64x1xf32, #tpu.memory_space<vmem>>, vector<64x1xf32>
    %12 = vector.broadcast %11 : vector<64x1xf32> to vector<64x128xf32>
    %13 = arith.addf %10, %12 : vector<64x128xf32>
    %cst_11 = arith.constant 0.000000e+00 : f32
    %14 = vector.broadcast %cst_11 : f32 to vector<64x128xf32>
    %15 = arith.maximumf %13, %14 : vector<64x128xf32>
    %16 = arith.truncf %15 : vector<64x128xf32> to vector<64x128xbf16>
    %c0_12 = arith.constant 0 : index
    %c0_13 = arith.constant 0 : index
    %17 = vector.load %arg6[%c0_12, %c0_13] : memref<1x64xbf16, #tpu.memory_space<vmem>>, vector<1x64xbf16>
    %cst_14 = arith.constant dense<0.000000e+00> : vector<1x128xf32>
    %18 = tpu.matmul %17, %16, %cst_14 {dimension_numbers = #tpu.dot_dimension_numbers<[1], [0], [0], [1], [0, 0, 1, 1], [], []>} : vector<1x64xbf16>, vector<64x128xbf16>, vector<1x128xf32> -> vector<1x128xf32>
    %c0_15 = arith.constant 0 : index
    %c0_16 = arith.constant 0 : index
    %19 = vector.load %arg7[%c0_15, %c0_16] : memref<1x128xf32, #tpu.memory_space<vmem>>, vector<1x128xf32>
    tpu.vector_store %arg7[%c0_15, %c0_16], %18 {strides = array<i32>} : memref<1x128xf32, #tpu.memory_space<vmem>>, vector<1x128xf32>,
    return
  }
  func.func @transform_0(%arg0: i32) -> (i32, i32) {
    %c0_i32 = arith.constant 0 : i32
    %c0_i32_0 = arith.constant 0 : i32
    return %c0_i32, %arg0 : i32, i32
  }
  func.func @transform_1(%arg0: i32) -> (i32, i32) {
    %c0_i32 = arith.constant 0 : i32
    %c0_i32_0 = arith.constant 0 : i32
    %c0_i32_1 = arith.constant 0 : i32
    return %c0_i32, %c0_i32_0 : i32, i32
  }
  func.func @transform_2(%arg0: i32) -> (i32, i32) {
    %c0_i32 = arith.constant 0 : i32
    %c0_i32_0 = arith.constant 0 : i32
    %c0_i32_1 = arith.constant 0 : i32
    return %c0_i32, %c0_i32_0 : i32, i32
  }
  func.func @transform_3(%arg0: i32) -> (i32, i32) {
    %c0_i32 = arith.constant 0 : i32
    %c0_i32_0 = arith.constant 0 : i32
    %c0_i32_1 = arith.constant 0 : i32
    return %c0_i32, %c0_i32_0 : i32, i32
  }
  func.func @transform_4(%arg0: i32) -> (i32, i32) {
    %c0_i32 = arith.constant 0 : i32
    %c0_i32_0 = arith.constant 0 : i32
    %c0_i32_1 = arith.constant 0 : i32
    return %c0_i32, %c0_i32_0 : i32, i32
  }
  func.func @transform_5(%arg0: i32) -> (i32, i32) {
    %c0_i32 = arith.constant 0 : i32
    %c0_i32_0 = arith.constant 0 : i32
    %c0_i32_1 = arith.constant 0 : i32
    return %c0_i32, %c0_i32_0 : i32, i32
  }
  func.func @transform_6(%arg0: i32) -> (i32, i32) {
    %c0_i32 = arith.constant 0 : i32
    %c0_i32_0 = arith.constant 0 : i32
    return %c0_i32, %arg0 : i32, i32
  }
}

</mosaic_0001>

<llo_original>
// kernel: tpu_custom_call.1
$region0: #{tpu_custom_call.1}
  #allocation0 [shape = 'u32[]', space=smem, size = 0x4, offset = 0x4, fixed_abs, tag = 'smem constant byte address 0x4 - core index']
  #allocation1 [shape = 'u32[144,128]{1,0:T(1,128)}', space=vmem, size = 0x12000, scoped, tag = 'internal scratch']
  %s0 = inlined_call_operand.vmem [shape: bf16[16,128], index: 0, kind: input, shape index: {}]
  %s1 = inlined_call_operand.vmem [shape: bf16[64,16], index: 1, kind: input, shape index: {}]
  %s2 = inlined_call_operand.vmem [shape: f32[64,1], index: 2, kind: input, shape index: {}]
  %s3 = inlined_call_operand.vmem [shape: bf16[64,64], index: 3, kind: input, shape index: {}]
  %s4 = inlined_call_operand.vmem [shape: f32[64,1], index: 4, kind: input, shape index: {}]
  %s5 = inlined_call_operand.vmem [shape: bf16[1,64], index: 5, kind: input, shape index: {}]
  %s6 = inlined_call_operand.hbm [shape: f32[1,128], index: 6, kind: output, shape index: {}]
  %s7 = sld [smem:[#allocation0]]
  $region34: #{tpu_custom_call.1} parent=0
    _
  %s9 = ssub.s32 1, %s7
  %s10 = scalar_select 0, %s9, %s7
  $region1: #{tpu_custom_call.1} parent=0
    #allocation2 [shape = 'u8[512]{0}', space=vmem, size = 0x400, scoped, tag = 'output window, operand 0, single buffered']
    #allocation3 [shape = 's32[1]{0}', space=sflag, size = 0x4, scoped, tag = 'scoped memory for tpu_custom_call.1']
    %11 = vsyncpa [#allocation3], 0
    // Predicated region
    $region2: #{tpu_custom_call.1} parent=1 // pred_check
      _
    $region3: #{tpu_custom_call.1} parent=1 // pred_check_branch
      %13 = sbr.rel (0) target = $region5
    $region4: #{tpu_custom_call.1} parent=1 // pred_region
      _
    $region5: #{tpu_custom_call.1} parent=1 // pred_fallthru
      _
    // Predicated region
    $region6: #{tpu_custom_call.1} parent=1 // pred_check
      _
    $region7: #{tpu_custom_call.1} parent=1 // pred_check_branch
      %15 = sbr.rel (0) target = $region9
    $region8: #{tpu_custom_call.1} parent=1 // pred_region
      _
    $region9: #{tpu_custom_call.1} parent=1 // pred_fallthru
      _
    // Predicated region
    $region10: #{tpu_custom_call.1} parent=1 // pred_check
      _
    $region11: #{tpu_custom_call.1} parent=1 // pred_check_branch
      %17 = sbr.rel (0) target = $region13
    $region12: #{tpu_custom_call.1} parent=1 // pred_region
      _
    $region13: #{tpu_custom_call.1} parent=1 // pred_fallthru
      _
    // Predicated region
    $region14: #{tpu_custom_call.1} parent=1 // pred_check
      _
    $region15: #{tpu_custom_call.1} parent=1 // pred_check_branch
      %19 = sbr.rel (0) target = $region17
    $region16: #{tpu_custom_call.1} parent=1 // pred_region
      _
    $region17: #{tpu_custom_call.1} parent=1 // pred_fallthru
      _
    // Predicated region
    $region18: #{tpu_custom_call.1} parent=1 // pred_check
      _
    $region19: #{tpu_custom_call.1} parent=1 // pred_check_branch
      %21 = sbr.rel (0) target = $region21
    $region20: #{tpu_custom_call.1} parent=1 // pred_region
      _
    $region21: #{tpu_custom_call.1} parent=1 // pred_fallthru
      _
    // Predicated region
    $region22: #{tpu_custom_call.1} parent=1 // pred_check
      _
    $region23: #{tpu_custom_call.1} parent=1 // pred_check_branch
      %23 = sbr.rel (0) target = $region25
    $region24: #{tpu_custom_call.1} parent=1 // pred_region
      _
    $region25: #{tpu_custom_call.1} parent=1 // pred_fallthru
      _
    %v25 = vld [vmem:[%s0] sm:$0xf]
    %v26 = vld [vmem:[%s0 + $0x4] sm:$0xf]
    %v27 = vld [vmem:[%s1] sm:$0xf]
    %v28 = vld [vmem:[%s1 + $0x4] sm:$0xf]
    %v29 = vld [vmem:[%s1 + $0x8] sm:$0xf]
    %v30 = vld [vmem:[%s1 + $0xc] sm:$0xf]
    %v31 = vld [vmem:[%s1 + $0x10] sm:$0xf]
    %v32 = vld [vmem:[%s1 + $0x14] sm:$0xf]
    %v33 = vld [vmem:[%s1 + $0x18] sm:$0xf]
    %v34 = vld [vmem:[%s1 + $0x1c] sm:$0xf]
    %v35 = vld [vmem:[%s2] sm:$0xff]
    %v36 = vld [vmem:[%s2 + $0x8] sm:$0xff]
    %v37 = vld [vmem:[%s2 + $0x10] sm:$0xff]
    %v38 = vld [vmem:[%s2 + $0x18] sm:$0xff]
    %v39 = vld [vmem:[%s2 + $0x20] sm:$0xff]
    %v40 = vld [vmem:[%s2 + $0x28] sm:$0xff]
    %v41 = vld [vmem:[%s2 + $0x30] sm:$0xff]
    %v42 = vld [vmem:[%s2 + $0x38] sm:$0xff]
    %44 = vset.pattern.permute.xlu0 0
    %45 = vperm.xlu0 %44, %v35
    %v46 = vpop.permute.xlu0 %45
    %49 = vset.pattern.permute.xlu0 0
    %50 = vperm.xlu0 %49, %v36
    %v51 = vpop.permute.xlu0 %50
    %54 = vset.pattern.permute.xlu0 0
    %55 = vperm.xlu0 %54, %v37
    %v56 = vpop.permute.xlu0 %55
    %59 = vset.pattern.permute.xlu0 0
    %60 = vperm.xlu0 %59, %v38
    %v61 = vpop.permute.xlu0 %60
    %64 = vset.pattern.permute.xlu0 0
    %65 = vperm.xlu0 %64, %v39
    %v66 = vpop.permute.xlu0 %65
    %69 = vset.pattern.permute.xlu0 0
    %70 = vperm.xlu0 %69, %v40
    %v71 = vpop.permute.xlu0 %70
    %74 = vset.pattern.permute.xlu0 0
    %75 = vperm.xlu0 %74, %v41
    %v76 = vpop.permute.xlu0 %75
    %79 = vset.pattern.permute.xlu0 0
    %80 = vperm.xlu0 %79, %v42
    %v81 = vpop.permute.xlu0 %80
    %v91 = vunpack.c.l.b16 %v27
    %v92 = vunpack.c.l.b16 %v28
    %v93 = vunpack.c.l.b16 %v29
    %v94 = vunpack.c.l.b16 %v30
    %v95 = vunpack.c.l.b16 %v31
    %v96 = vunpack.c.l.b16 %v32
    %v97 = vunpack.c.l.b16 %v33
    %v98 = vunpack.c.l.b16 %v34
    %v99 = vpack.c.b16 %v92, %v91
    %v100 = vpack.c.b16 %v94, %v93
    %v101 = vpack.c.b16 %v96, %v95
    %v102 = vpack.c.b16 %v98, %v97
    %v105 = vunpack.c.l.b16 %v25
    %v106 = vunpack.c.l.b16 %v26
    %v107 = vpack.c.b16 %v106, %v105
    %vm109 = vcmask 130048
    %v111 = vsel %vm109, %v99, 0
    %v114 = vsel %vm109, %v100, 0
    %v117 = vsel %vm109, %v101, 0
    %v120 = vsel %vm109, %v102, 0
    %122 = vmatprep.subr.bf16.mxu0 0
    %123 = vmatpush1.bf16.msra.mxu0 %v107
    %124 = vmatprep.subr.bf16.mxu0 0
    %125 = vmatpush1.bf16.msra.mxu0 0
    %126 = vmatprep.subr.bf16.mxu0 0
    %127 = vmatpush1.bf16.msra.mxu0 0
    %128 = vmatprep.subr.bf16.mxu0 0
    %129 = vmatpush1.bf16.msra.mxu0 0
    %130 = vmatprep.subr.bf16.mxu0 0
    %131 = vmatpush1.bf16.msra.mxu0 0
    %132 = vmatprep.subr.bf16.mxu0 0
    %133 = vmatpush1.bf16.msra.mxu0 0
    %134 = vmatprep.subr.bf16.mxu0 0
    %135 = vmatpush1.bf16.msra.mxu0 0
    %136 = vmatprep.subr.bf16.mxu0 0
    %137 = vmatpush1.bf16.msra.mxu0 0
    %138 = vmatprep.subr.bf16.mxu0 0
    %139 = vmatpush1.bf16.msra.mxu0 0
    %140 = vmatprep.subr.bf16.mxu0 0
    %141 = vmatpush1.bf16.msra.mxu0 0
    %142 = vmatprep.subr.bf16.mxu0 0
    %143 = vmatpush1.bf16.msra.mxu0 0
    %144 = vmatprep.subr.bf16.mxu0 0
    %145 = vmatpush1.bf16.msra.mxu0 0
    %146 = vmatprep.subr.bf16.mxu0 0
    %147 = vmatpush1.bf16.msra.mxu0 0
    %148 = vmatprep.subr.bf16.mxu0 0
    %149 = vmatpush1.bf16.msra.mxu0 0
    %150 = vmatprep.subr.bf16.mxu0 0
    %151 = vmatpush1.bf16.msra.mxu0 0
    %152 = vmatprep.subr.bf16.mxu0 0
    %153 = vmatpush1.bf16.msra.mxu0 0
    %154 = vmatprep.mubr.bf16.mxu0 0
    %155 = vmatmul.mubr.bf16.gmra.mrb[0].mxu0 %v111
    %v156 = vpop.f32.mrb[0].mxu0
    %v157 = vadd.f32 %v46, %v156
    %v158 = vpop.f32.mrb[0].mxu0
    %v159 = vpop.f32.mrb[0].mxu0
    %v160 = vadd.f32 %v51, %v159
    %v161 = vpop.f32.mrb[0].mxu0
    %162 = vmatprep.mubr.bf16.mxu0 0
    %163 = vmatmul.mubr.bf16.gmra.mrb[0].mxu0 %v114
    %v164 = vpop.f32.mrb[0].mxu0
    %v165 = vadd.f32 %v56, %v164
    %v166 = vpop.f32.mrb[0].mxu0
    %v167 = vpop.f32.mrb[0].mxu0
    %v168 = vadd.f32 %v61, %v167
    %v169 = vpop.f32.mrb[0].mxu0
    %170 = vmatprep.mubr.bf16.mxu0 0
    %171 = vmatmul.mubr.bf16.gmra.mrb[0].mxu0 %v117
    %v172 = vpop.f32.mrb[0].mxu0
    %v173 = vadd.f32 %v66, %v172
    %v174 = vpop.f32.mrb[0].mxu0
    %v175 = vpop.f32.mrb[0].mxu0
    %v176 = vadd.f32 %v71, %v175
    %v177 = vpop.f32.mrb[0].mxu0
    %178 = vmatprep.mubr.bf16.mxu0 0
    %179 = vmatmul.mubr.bf16.gmra.mrb[0].mxu0 %v120
    %v180 = vpop.f32.mrb[0].mxu0
    %v181 = vadd.f32 %v76, %v180
    %v182 = vpop.f32.mrb[0].mxu0
    %v183 = vpop.f32.mrb[0].mxu0
    %v184 = vadd.f32 %v81, %v183
    %v185 = vpop.f32.mrb[0].mxu0
    %186 = vdwg.mxu0
    %v187 = vmax.f32 %v157, 0.0
    %v188 = vmax.f32 %v160, 0.0
    %v189 = vmax.f32 %v165, 0.0
    %v190 = vmax.f32 %v168, 0.0
    %v191 = vmax.f32 %v173, 0.0
    %v192 = vmax.f32 %v176, 0.0
    %v193 = vmax.f32 %v181, 0.0
    %v194 = vmax.f32 %v184, 0.0
    %v195 = vpack.c.bf16 %v188, %v187
    %v196 = vpack.c.bf16 %v190, %v189
    %v197 = vpack.c.bf16 %v192, %v191
    %v198 = vpack.c.bf16 %v194, %v193
    %v199 = vld [vmem:[%s3] sm:$0xf]
    %v200 = vld [vmem:[%s3 + $0x4] sm:$0xf]
    %v201 = vld [vmem:[%s3 + $0x8] sm:$0xf]
    %v202 = vld [vmem:[%s3 + $0xc] sm:$0xf]
    %v203 = vld [vmem:[%s3 + $0x10] sm:$0xf]
    %v204 = vld [vmem:[%s3 + $0x14] sm:$0xf]
    %v205 = vld [vmem:[%s3 + $0x18] sm:$0xf]
    %v206 = vld [vmem:[%s3 + $0x1c] sm:$0xf]
    %v207 = vld [vmem:[%s4] sm:$0xff]
    %v208 = vld [vmem:[%s4 + $0x8] sm:$0xff]
    %v209 = vld [vmem:[%s4 + $0x10] sm:$0xff]
    %v210 = vld [vmem:[%s4 + $0x18] sm:$0xff]
    %v211 = vld [vmem:[%s4 + $0x20] sm:$0xff]
    %v212 = vld [vmem:[%s4 + $0x28] sm:$0xff]
    %v213 = vld [vmem:[%s4 + $0x30] sm:$0xff]
    %v214 = vld [vmem:[%s4 + $0x38] sm:$0xff]
    %216 = vset.pattern.permute.xlu0 0
    %217 = vperm.xlu0 %216, %v207
    %v218 = vpop.permute.xlu0 %217
    %221 = vset.pattern.permute.xlu0 0
    %222 = vperm.xlu0 %221, %v208
    %v223 = vpop.permute.xlu0 %222
    %226 = vset.pattern.permute.xlu0 0
    %227 = vperm.xlu0 %226, %v209
    %v228 = vpop.permute.xlu0 %227
    %231 = vset.pattern.permute.xlu0 0
    %232 = vperm.xlu0 %231, %v210
    %v233 = vpop.permute.xlu0 %232
    %236 = vset.pattern.permute.xlu0 0
    %237 = vperm.xlu0 %236, %v211
    %v238 = vpop.permute.xlu0 %237
    %241 = vset.pattern.permute.xlu0 0
    %242 = vperm.xlu0 %241, %v212
    %v243 = vpop.permute.xlu0 %242
    %246 = vset.pattern.permute.xlu0 0
    %247 = vperm.xlu0 %246, %v213
    %v248 = vpop.permute.xlu0 %247
    %251 = vset.pattern.permute.xlu0 0
    %252 = vperm.xlu0 %251, %v214
    %v253 = vpop.permute.xlu0 %252
    %v263 = vunpack.c.l.b16 %v199
    %v264 = vunpack.c.l.b16 %v200
    %v265 = vunpack.c.l.b16 %v201
    %v266 = vunpack.c.l.b16 %v202
    %v267 = vunpack.c.l.b16 %v203
    %v268 = vunpack.c.l.b16 %v204
    %v269 = vunpack.c.l.b16 %v205
    %v270 = vunpack.c.l.b16 %v206
    %v271 = vpack.c.b16 %v264, %v263
    %v272 = vpack.c.b16 %v266, %v265
    %v273 = vpack.c.b16 %v268, %v267
    %v274 = vpack.c.b16 %v270, %v269
    %vm275 = vcmask 523264
    %v277 = vsel %vm275, %v271, 0
    %v280 = vsel %vm275, %v272, 0
    %v283 = vsel %vm275, %v273, 0
    %v286 = vsel %vm275, %v274, 0
    %288 = vmatprep.subr.bf16.mxu0 0
    %289 = vmatpush1.bf16.msra.mxu0 %v195
    %290 = vmatprep.subr.bf16.mxu0 0
    %291 = vmatpush1.bf16.msra.mxu0 %v196
    %292 = vmatprep.subr.bf16.mxu0 0
    %293 = vmatpush1.bf16.msra.mxu0 %v197
    %294 = vmatprep.subr.bf16.mxu0 0
    %295 = vmatpush1.bf16.msra.mxu0 %v198
    %296 = vmatprep.subr.bf16.mxu0 0
    %297 = vmatpush1.bf16.msra.mxu0 0
    %298 = vmatprep.subr.bf16.mxu0 0
    %299 = vmatpush1.bf16.msra.mxu0 0
    %300 = vmatprep.subr.bf16.mxu0 0
    %301 = vmatpush1.bf16.msra.mxu0 0
    %302 = vmatprep.subr.bf16.mxu0 0
    %303 = vmatpush1.bf16.msra.mxu0 0
    %304 = vmatprep.subr.bf16.mxu0 0
    %305 = vmatpush1.bf16.msra.mxu0 0
    %306 = vmatprep.subr.bf16.mxu0 0
    %307 = vmatpush1.bf16.msra.mxu0 0
    %308 = vmatprep.subr.bf16.mxu0 0
    %309 = vmatpush1.bf16.msra.mxu0 0
    %310 = vmatprep.subr.bf16.mxu0 0
    %311 = vmatpush1.bf16.msra.mxu0 0
    %312 = vmatprep.subr.bf16.mxu0 0
    %313 = vmatpush1.bf16.msra.mxu0 0
    %314 = vmatprep.subr.bf16.mxu0 0
    %315 = vmatpush1.bf16.msra.mxu0 0
    %316 = vmatprep.subr.bf16.mxu0 0
    %317 = vmatpush1.bf16.msra.mxu0 0
    %318 = vmatprep.subr.bf16.mxu0 0
    %319 = vmatpush1.bf16.msra.mxu0 0
    %320 = vmatprep.mubr.bf16.mxu0 0
    %321 = vmatmul.mubr.bf16.gmra.mrb[0].mxu0 %v277
    %v322 = vpop.f32.mrb[0].mxu0
    %v323 = vadd.f32 %v218, %v322
    %v324 = vpop.f32.mrb[0].mxu0
    %v325 = vpop.f32.mrb[0].mxu0
    %v326 = vadd.f32 %v223, %v325
    %v327 = vpop.f32.mrb[0].mxu0
    %328 = vmatprep.mubr.bf16.mxu0 0
    %329 = vmatmul.mubr.bf16.gmra.mrb[0].mxu0 %v280
    %v330 = vpop.f32.mrb[0].mxu0
    %v331 = vadd.f32 %v228, %v330
    %v332 = vpop.f32.mrb[0].mxu0
    %v333 = vpop.f32.mrb[0].mxu0
    %v334 = vadd.f32 %v233, %v333
    %v335 = vpop.f32.mrb[0].mxu0
    %336 = vmatprep.mubr.bf16.mxu0 0
    %337 = vmatmul.mubr.bf16.gmra.mrb[0].mxu0 %v283
    %v338 = vpop.f32.mrb[0].mxu0
    %v339 = vadd.f32 %v238, %v338
    %v340 = vpop.f32.mrb[0].mxu0
    %v341 = vpop.f32.mrb[0].mxu0
    %v342 = vadd.f32 %v243, %v341
    %v343 = vpop.f32.mrb[0].mxu0
    %344 = vmatprep.mubr.bf16.mxu0 0
    %345 = vmatmul.mubr.bf16.gmra.mrb[0].mxu0 %v286
    %v346 = vpop.f32.mrb[0].mxu0
    %v347 = vadd.f32 %v248, %v346
    %v348 = vpop.f32.mrb[0].mxu0
    %v349 = vpop.f32.mrb[0].mxu0
    %v350 = vadd.f32 %v253, %v349
    %v351 = vpop.f32.mrb[0].mxu0
    %352 = vdwg.mxu0
    %v353 = vmax.f32 %v323, 0.0
    %v354 = vmax.f32 %v326, 0.0
    %v355 = vmax.f32 %v331, 0.0
    %v356 = vmax.f32 %v334, 0.0
    %v357 = vmax.f32 %v339, 0.0
    %v358 = vmax.f32 %v342, 0.0
    %v359 = vmax.f32 %v347, 0.0
    %v360 = vmax.f32 %v350, 0.0
    %v361 = vpack.c.bf16 %v354, %v353
    %v362 = vpack.c.bf16 %v356, %v355
    %v363 = vpack.c.bf16 %v358, %v357
    %v364 = vpack.c.bf16 %v360, %v359
    %v365 = vld [vmem:[%s5] sm:$0x1]
    %v367 = vsel %vm275, %v365, 0
    %369 = vmatprep.subr.bf16.mxu0 0
    %370 = vmatpush1.bf16.msra.mxu0 %v361
    %371 = vmatprep.subr.bf16.mxu0 0
    %372 = vmatpush1.bf16.msra.mxu0 %v362
    %373 = vmatprep.subr.bf16.mxu0 0
    %374 = vmatpush1.bf16.msra.mxu0 %v363
    %375 = vmatprep.subr.bf16.mxu0 0
    %376 = vmatpush1.bf16.msra.mxu0 %v364
    %377 = vmatprep.subr.bf16.mxu0 0
    %378 = vmatpush1.bf16.msra.mxu0 0
    %379 = vmatprep.subr.bf16.mxu0 0
    %380 = vmatpush1.bf16.msra.mxu0 0
    %381 = vmatprep.subr.bf16.mxu0 0
    %382 = vmatpush1.bf16.msra.mxu0 0
    %383 = vmatprep.subr.bf16.mxu0 0
    %384 = vmatpush1.bf16.msra.mxu0 0
    %385 = vmatprep.subr.bf16.mxu0 0
    %386 = vmatpush1.bf16.msra.mxu0 0
    %387 = vmatprep.subr.bf16.mxu0 0
    %388 = vmatpush1.bf16.msra.mxu0 0
    %389 = vmatprep.subr.bf16.mxu0 0
    %390 = vmatpush1.bf16.msra.mxu0 0
    %391 = vmatprep.subr.bf16.mxu0 0
    %392 = vmatpush1.bf16.msra.mxu0 0
    %393 = vmatprep.subr.bf16.mxu0 0
    %394 = vmatpush1.bf16.msra.mxu0 0
    %395 = vmatprep.subr.bf16.mxu0 0
    %396 = vmatpush1.bf16.msra.mxu0 0
    %397 = vmatprep.subr.bf16.mxu0 0
    %398 = vmatpush1.bf16.msra.mxu0 0
    %399 = vmatprep.subr.bf16.mxu0 0
    %400 = vmatpush1.bf16.msra.mxu0 0
    %401 = vmatprep.mubr.bf16.mxu0 0
    %402 = vmatmul.mubr.bf16.gmra.mrb[0].mxu0 %v367
    %v403 = vpop.f32.mrb[0].mxu0
    %v404 = vadd.f32 0.0, %v403
    %v405 = vpop.f32.mrb[0].mxu0
    %v406 = vpop.f32.mrb[0].mxu0
    %v407 = vpop.f32.mrb[0].mxu0
    %408 = vdwg.mxu0
    %409 = vst [vmem:[#allocation2] sm:$0x1] %v404
    // Predicated region
    $region26: #{tpu_custom_call.1} parent=1 // pred_check
      _
    $region27: #{tpu_custom_call.1} parent=1 // pred_check_branch
      %411 = sbr.rel (0) target = $region29
    $region28: #{tpu_custom_call.1} parent=1 // pred_region
      %s413 = ssub.s32 16, 16
      %414 = vsyncadd [#allocation3], %s413
      %s416 = sshll.u32 [#allocation2], 4
      %s417 = int_to_ptr.vmem [resolvable:$true] %s416
      %419 = dma.vmem_to_hbm [thread:$0]  %s417, 16, %s6, [#allocation3]
    $region29: #{tpu_custom_call.1} parent=1 // pred_fallthru
      _
    // Predicated region
    $region30: #{tpu_custom_call.1} parent=1 // pred_check
      _
    $region31: #{tpu_custom_call.1} parent=1 // pred_check_branch
      %421 = sbr.rel (0) target = $region33
    $region32: #{tpu_custom_call.1} parent=1 // pred_region
      %422 = dma.done [#allocation3], 16
    $region33: #{tpu_custom_call.1} parent=1 // pred_fallthru
      _
    %423 = vsyncpa [#allocation3], 1

</llo_original>
